<compile_context>
chip_gen: v5e
topology: v5e:2x2
jax: 0.10.0
libtpu: 0.0.40
codegen_flags: <defaults>
</compile_context>

<pallas_src>
import jax
import jax.numpy as jnp
from jax.experimental import pallas as pl
from jax.experimental.pallas import tpu as pltpu

_EPS = 1e-15            # geoopt min-norm clamp
_BALL_EPS = 4e-3        # geoopt float32 ball-boundary eps
_ATANH_CLAMP = 1.0 - 1e-7
_MAXNORM = 1.0 - _BALL_EPS
_LANE = 128
_SUBLANE = 8


# ---------------- reference hyperbolic math (pure jnp, used for the host-side check
# ---------------- and for the hoisted expmap0(bias) in the wrapper) ----------------

def _artanh(x):
    x = jnp.clip(x, -_ATANH_CLAMP, _ATANH_CLAMP)
    return 0.5 * (jnp.log1p(x) - jnp.log1p(-x))


def _norm(x):
    return jnp.maximum(jnp.sqrt(jnp.sum(x * x, axis=-1, keepdims=True)), _EPS)


def _project(x):
    norm = _norm(x)
    return jnp.where(norm > _MAXNORM, x / norm * _MAXNORM, x)


def _expmap0(u):
    u_norm = _norm(u)
    return _project(jnp.tanh(u_norm) * u / u_norm)


def _logmap0(y):
    y_norm = _norm(y)
    return _artanh(y_norm) * y / y_norm


def _mobius_add(x, y):
    x2 = jnp.sum(x * x, axis=-1, keepdims=True)
    y2 = jnp.sum(y * y, axis=-1, keepdims=True)
    xy = jnp.sum(x * y, axis=-1, keepdims=True)
    num = (1.0 + 2.0 * xy + y2) * x + (1.0 - x2) * y
    denom = jnp.maximum(1.0 + 2.0 * xy + x2 * y2, _EPS)
    return num / denom


def _mobius_matvec(x, w_t):
    x_norm = _norm(x)
    mx = jnp.dot(x, w_t, preferred_element_type=jnp.float32)
    mx_norm = _norm(mx)
    res = jnp.tanh(mx_norm / x_norm * _artanh(x_norm)) * (mx / mx_norm)
    zero_mask = jnp.all(mx == 0.0, axis=-1, keepdims=True)
    res = jnp.where(zero_mask, jnp.zeros_like(res), res)
    return _project(res)


def _mob_linear(x, w_t, b):
    out = _mobius_matvec(x, w_t)
    return _project(_mobius_add(out, _expmap0(b)))


def _mobius_fn_apply_relu(x):
    return _project(_expmap0(jnp.maximum(_logmap0(x), 0.0)))


def _hypff_reference(x, w1t, b1, w2t, b2, w3t, b3):
    h = _mob_linear(x, w1t, b1)
    h = _mobius_fn_apply_relu(h)
    h = _mob_linear(h, w2t, b2)
    h = _mobius_fn_apply_relu(h)
    h = _mob_linear(h, w3t, b3)
    return h


# ---------------- in-kernel optimized hyperbolic math ----------------

def _rcp(x):
    # approx reciprocal -> EUP slot; reused per norm instead of repeated divides.
    return pl.reciprocal(x, approx=True)


def _k_artanh(x):
    x = jnp.clip(x, -_ATANH_CLAMP, _ATANH_CLAMP)
    return 0.5 * jnp.log((1.0 + x) * _rcp(1.0 - x))


def _k_norm(x):
    return jnp.maximum(jnp.sqrt(jnp.sum(x * x, axis=-1, keepdims=True)), _EPS)


def _k_project(x):
    n = _k_norm(x)
    scale = jnp.where(n > _MAXNORM, _MAXNORM * _rcp(n), 1.0)
    return x * scale


def _k_expmap0(u):
    # project fused in: result norm == tanh(|u|) >= 0, so clamp the scale.
    un = _k_norm(u)
    scale = jnp.minimum(jnp.tanh(un), _MAXNORM) * _rcp(un)
    return u * scale


def _k_logmap0(y):
    yn = _k_norm(y)
    return (_k_artanh(yn) * _rcp(yn)) * y


def _k_mobius_add(x, y):
    x2 = jnp.sum(x * x, axis=-1, keepdims=True)
    y2 = jnp.sum(y * y, axis=-1, keepdims=True)
    xy = jnp.sum(x * y, axis=-1, keepdims=True)
    num = (1.0 + 2.0 * xy + y2) * x + (1.0 - x2) * y
    denom = jnp.maximum(1.0 + 2.0 * xy + x2 * y2, _EPS)
    return num * _rcp(denom)


def _k_mobius_matvec(x, w_t):
    xn = _k_norm(x)
    mx = jnp.dot(x, w_t, preferred_element_type=jnp.float32)
    mxn = _k_norm(mx)
    # project fused in: result norm == tanh(arg) with arg >= 0 -> clamp scale.
    arg = mxn * _rcp(xn) * _k_artanh(xn)
    scale = jnp.minimum(jnp.tanh(arg), _MAXNORM) * _rcp(mxn)
    res = mx * scale
    zero_mask = jnp.all(mx == 0.0, axis=-1, keepdims=True)
    return jnp.where(zero_mask, jnp.zeros_like(res), res)


def _k_mob_linear(x, w_t, bias_point):
    # bias_point = project(expmap0(b)) is precomputed in the wrapper.
    mv = _k_mobius_matvec(x, w_t)
    return _k_project(_k_mobius_add(mv, bias_point))


def _k_mobius_relu_apply(x):
    # project(expmap0(relu(logmap0(x)))); _k_expmap0 already clamps to the ball.
    return _k_expmap0(jnp.maximum(_k_logmap0(x), 0.0))


# ---------------- Pallas kernel ----------------

def hypff_kernel(x_ref, w1_ref, p1_ref, w2_ref, p2_ref, w3_ref, p3_ref, o_ref):
    x = x_ref[...].astype(jnp.float32)
    h = _k_mob_linear(x, w1_ref[...], p1_ref[...])
    h = _k_mobius_relu_apply(h)
    h = _k_mob_linear(h, w2_ref[...], p2_ref[...])
    h = _k_mobius_relu_apply(h)
    h = _k_mob_linear(h, w3_ref[...], p3_ref[...])
    o_ref[...] = h.astype(o_ref.dtype)


def _round_up(n, m):
    return ((n + m - 1) // m) * m


def _pad2d(a, rows, cols):
    r, c = a.shape
    return jnp.pad(a, ((0, rows - r), (0, cols - c)))


def hypff_forward(x, w1t, b1, w2t, b2, w3t, b3, *, batch_tile=1024):
    """x: (B, d_in) f32 on the Poincare ball.
    wNt: (in, out) = nn.Linear weight transposed.  bN: (out,) or (1, out)."""
    x = x.astype(jnp.float32)
    B, d_in = x.shape
    h1 = w1t.shape[1]
    h2 = w2t.shape[1]
    d_out = w3t.shape[1]

    # ---- lane padding: every feature dim -> multiple of 128 (zero columns are
    # numerically transparent for all the hyperbolic ops used here).
    d_in_p = _round_up(max(d_in, _LANE), _LANE)
    h1_p = _round_up(max(h1, _LANE), _LANE)
    h2_p = _round_up(max(h2, _LANE), _LANE)
    d_out_p = _round_up(max(d_out, _LANE), _LANE)

    # ---- batch tiling: multiple of 8 sublanes, large default tile, and >=2
    # grid steps for reasonably sized batches so both v7x TensorCores get work.
    tb = min(batch_tile, _round_up(B, _SUBLANE))
    if B >= 256:
        tb = min(tb, _round_up(_round_up(B, _SUBLANE) // 2, _SUBLANE))
    tb = max(tb, _SUBLANE)
    B_pad = _round_up(B, tb)
    grid = (B_pad // tb,)

    # ---- pad operands (zero rows of x are safe: everything stays finite).
    x_p = _pad2d(x, B_pad, d_in_p)
    w1p = _pad2d(w1t.astype(jnp.float32), d_in_p, h1_p)
    w2p = _pad2d(w2t.astype(jnp.float32), h1_p, h2_p)
    w3p = _pad2d(w3t.astype(jnp.float32), h2_p, d_out_p)

    # ---- hoist expmap0(bias) (constant across the whole grid) to the wrapper.
    p1 = _expmap0(_pad2d(jnp.asarray(b1, jnp.float32).reshape(1, -1), 1, h1_p))
    p2 = _expmap0(_pad2d(jnp.asarray(b2, jnp.float32).reshape(1, -1), 1, h2_p))
    p3 = _expmap0(_pad2d(jnp.asarray(b3, jnp.float32).reshape(1, -1), 1, d_out_p))

    row_map = lambda i: (i, 0)
    full_map = lambda i: (0, 0)

    w_bytes = 4 * (d_in_p * h1_p + h1_p * h2_p + h2_p * d_out_p)
    cost = pl.CostEstimate(
        flops=2 * B_pad * (d_in_p * h1_p + h1_p * h2_p + h2_p * d_out_p),
        transcendentals=48 * B_pad,  # tanh / log / sqrt / rcp per row, rough
        bytes_accessed=4 * B_pad * (d_in_p + d_out_p) + w_bytes * grid[0],
    )

    out = pl.pallas_call(
        hypff_kernel,
        out_shape=jax.ShapeDtypeStruct((B_pad, d_out_p), jnp.float32),
        grid=grid,
        in_specs=[
            pl.BlockSpec((tb, d_in_p), row_map),
            pl.BlockSpec((d_in_p, h1_p), full_map),
            pl.BlockSpec((1, h1_p), full_map),
            pl.BlockSpec((h1_p, h2_p), full_map),
            pl.BlockSpec((1, h2_p), full_map),
            pl.BlockSpec((h2_p, d_out_p), full_map),
            pl.BlockSpec((1, d_out_p), full_map),
        ],
        out_specs=pl.BlockSpec((tb, d_out_p), row_map),
        compiler_params=pltpu.CompilerParams(
            dimension_semantics=("parallel",)),
        cost_estimate=cost,
    )(x_p, w1p, p1, w2p, p2, w3p, p3)

    return out[:B, :d_out]


# ---------------- parameter init (deterministic, nn.Linear default scheme) ----------------

def _init_linear(key, fan_in, fan_out):
    kw, kb = jax.random.split(key)
    bound = 1.0 / jnp.sqrt(jnp.float32(fan_in))
    w = jax.random.uniform(kw, (fan_out, fan_in), jnp.float32, -bound, bound)
    b = jax.random.uniform(kb, (fan_out,), jnp.float32, -bound, bound)
    return w.T, b.reshape(1, fan_out)  # pre-transposed weight, bias as a row


if __name__ == "__main__":
    key = jax.random.PRNGKey(0)
    B, D_IN, H1, H2, D_OUT = 8, 16, 32, 32, 8

    k_x, k1, k2, k3 = jax.random.split(key, 4)

    # Input on the Poincare ball (expmap0 of a small tangent vector).
    x_tan = 0.3 * jax.random.normal(k_x, (B, D_IN), jnp.float32)
    x = _expmap0(x_tan)

    w1t, b1 = _init_linear(k1, D_IN, H1)
    w2t, b2 = _init_linear(k2, H1, H2)
    w3t, b3 = _init_linear(k3, H2, D_OUT)

    out = hypff_forward(x, w1t, b1, w2t, b2, w3t, b3)
    out = jax.block_until_ready(out)

    # Pure-JAX reference (original un-fused math) for a sanity check.
    ref = _hypff_reference(x, w1t, b1, w2t, b2, w3t, b3)
    assert out.shape == (B, D_OUT)
    assert bool(jnp.all(jnp.isfinite(out)))
    # approx reciprocals / single-log artanh perturb numerics slightly.
    assert bool(jnp.allclose(out, ref, rtol=2e-3, atol=2e-3)), (
        float(jnp.max(jnp.abs(out - ref))))

    print("KERNEL_OK")
</pallas_src>

<mosaic_0001>
module attributes {stable_mosaic.version = 11 : i64} {
  func.func @hypff_kernel(%arg0: i32, %arg1: memref<8x128xf32, #tpu.memory_space<vmem>>, %arg2: memref<128x128xf32, #tpu.memory_space<vmem>>, %arg3: memref<1x128xf32, #tpu.memory_space<vmem>>, %arg4: memref<128x128xf32, #tpu.memory_space<vmem>>, %arg5: memref<1x128xf32, #tpu.memory_space<vmem>>, %arg6: memref<128x128xf32, #tpu.memory_space<vmem>>, %arg7: memref<1x128xf32, #tpu.memory_space<vmem>>, %arg8: memref<8x128xf32, #tpu.memory_space<vmem>>) attributes {dimension_semantics = [#tpu.dimension_semantics<parallel>], iteration_bounds = array<i64: 1>, scalar_prefetch = 0 : i64, scratch_operands = 0 : i64, tpu.core_type = #tpu.core_type<tc>, window_params = [{transform_indices = @transform_0, window_bounds = array<i64: 8, 128>}, {pipeline_mode = #tpu.pipeline_mode<synchronous>, transform_indices = @transform_1, window_bounds = array<i64: 128, 128>}, {pipeline_mode = #tpu.pipeline_mode<synchronous>, transform_indices = @transform_2, window_bounds = array<i64: 1, 128>}, {pipeline_mode = #tpu.pipeline_mode<synchronous>, transform_indices = @transform_3, window_bounds = array<i64: 128, 128>}, {pipeline_mode = #tpu.pipeline_mode<synchronous>, transform_indices = @transform_4, window_bounds = array<i64: 1, 128>}, {pipeline_mode = #tpu.pipeline_mode<synchronous>, transform_indices = @transform_5, window_bounds = array<i64: 128, 128>}, {pipeline_mode = #tpu.pipeline_mode<synchronous>, transform_indices = @transform_6, window_bounds = array<i64: 1, 128>}, {transform_indices = @transform_7, window_bounds = array<i64: 8, 128>}]} {
    %c0 = arith.constant 0 : index
    %c0_0 = arith.constant 0 : index
    %0 = vector.load %arg1[%c0, %c0_0] : memref<8x128xf32, #tpu.memory_space<vmem>>, vector<8x128xf32>
    %c0_1 = arith.constant 0 : index
    %c0_2 = arith.constant 0 : index
    %1 = vector.load %arg2[%c0_1, %c0_2] : memref<128x128xf32, #tpu.memory_space<vmem>>, vector<128x128xf32>
    %c0_3 = arith.constant 0 : index
    %c0_4 = arith.constant 0 : index
    %2 = vector.load %arg3[%c0_3, %c0_4] : memref<1x128xf32, #tpu.memory_space<vmem>>, vector<1x128xf32>
    %3 = arith.mulf %0, %0 : vector<8x128xf32>
    %cst = arith.constant dense<0.000000e+00> : vector<8xf32>
    %4 = vector.multi_reduction <add>, %3, %cst [1] : vector<8x128xf32> to vector<8xf32>
    %5 = vector.shape_cast %4 : vector<8xf32> to vector<8x1xf32>
    %6 = math.sqrt %5 : vector<8x1xf32>
    %cst_5 = arith.constant 1.000000e-15 : f32
    %7 = vector.broadcast %cst_5 : f32 to vector<8x1xf32>
    %8 = arith.maximumf %6, %7 : vector<8x1xf32>
    %cst_6 = arith.constant dense<0.000000e+00> : vector<8x128xf32>
    %9 = tpu.matmul %0, %1, %cst_6 {dimension_numbers = #tpu.dot_dimension_numbers<[1], [0], [0], [1], [0, 0, 1, 1], [], []>} : vector<8x128xf32>, vector<128x128xf32>, vector<8x128xf32> -> vector<8x128xf32>
    %10 = arith.mulf %9, %9 : vector<8x128xf32>
    %cst_7 = arith.constant dense<0.000000e+00> : vector<8xf32>
    %11 = vector.multi_reduction <add>, %10, %cst_7 [1] : vector<8x128xf32> to vector<8xf32>
    %12 = vector.shape_cast %11 : vector<8xf32> to vector<8x1xf32>
    %13 = math.sqrt %12 : vector<8x1xf32>
    %cst_8 = arith.constant 1.000000e-15 : f32
    %14 = vector.broadcast %cst_8 : f32 to vector<8x1xf32>
    %15 = arith.maximumf %13, %14 : vector<8x1xf32>
    %16 = tpu.reciprocal %8 {approx = true} : vector<8x1xf32> -> vector<8x1xf32>
    %17 = arith.mulf %15, %16 : vector<8x1xf32>
    %cst_9 = arith.constant -0.99999988 : f32
    %cst_10 = arith.constant 0.99999988 : f32
    %18 = vector.broadcast %cst_9 : f32 to vector<8x1xf32>
    %19 = arith.maximumf %18, %8 : vector<8x1xf32>
    %20 = vector.broadcast %cst_10 : f32 to vector<8x1xf32>
    %21 = arith.minimumf %20, %19 : vector<8x1xf32>
    %cst_11 = arith.constant 1.000000e+00 : f32
    %22 = vector.broadcast %cst_11 : f32 to vector<8x1xf32>
    %23 = arith.addf %22, %21 : vector<8x1xf32>
    %cst_12 = arith.constant 1.000000e+00 : f32
    %24 = vector.broadcast %cst_12 : f32 to vector<8x1xf32>
    %25 = arith.subf %24, %21 : vector<8x1xf32>
    %26 = tpu.reciprocal %25 {approx = true} : vector<8x1xf32> -> vector<8x1xf32>
    %27 = arith.mulf %23, %26 : vector<8x1xf32>
    %28 = math.log %27 : vector<8x1xf32>
    %cst_13 = arith.constant 5.000000e-01 : f32
    %29 = vector.broadcast %cst_13 : f32 to vector<8x1xf32>
    %30 = arith.mulf %29, %28 : vector<8x1xf32>
    %31 = arith.mulf %17, %30 : vector<8x1xf32>
    %32 = math.tanh %31 : vector<8x1xf32>
    %cst_14 = arith.constant 0.995999991 : f32
    %33 = vector.broadcast %cst_14 : f32 to vector<8x1xf32>
    %34 = arith.minimumf %32, %33 : vector<8x1xf32>
    %35 = tpu.reciprocal %15 {approx = true} : vector<8x1xf32> -> vector<8x1xf32>
    %36 = arith.mulf %34, %35 : vector<8x1xf32>
    %37 = vector.broadcast %36 : vector<8x1xf32> to vector<8x128xf32>
    %38 = arith.mulf %9, %37 : vector<8x128xf32>
    %cst_15 = arith.constant 0.000000e+00 : f32
    %39 = vector.broadcast %cst_15 : f32 to vector<8x128xf32>
    %40 = arith.cmpf oeq, %9, %39 : vector<8x128xf32>
    %cst_16 = arith.constant 1.000000e+00 : f32
    %cst_17 = arith.constant 0.000000e+00 : f32
    %41 = vector.broadcast %cst_16 : f32 to vector<8x128xf32>
    %42 = vector.broadcast %cst_17 : f32 to vector<8x128xf32>
    %43 = arith.select %40, %41, %42 : vector<8x128xi1>, vector<8x128xf32>
    %cst_18 = arith.constant dense<0x7F800000> : vector<8xf32>
    %44 = vector.multi_reduction <minimumf>, %43, %cst_18 [1] : vector<8x128xf32> to vector<8xf32>
    %cst_19 = arith.constant 0.000000e+00 : f32
    %45 = vector.broadcast %cst_19 : f32 to vector<8xf32>
    %46 = arith.cmpf ogt, %44, %45 : vector<8xf32>
    %47 = vector.shape_cast %46 : vector<8xi1> to vector<8x1xi1>
    %cst_20 = arith.constant 0.000000e+00 : f32
    %48 = vector.broadcast %cst_20 : f32 to vector<8x128xf32>
    %49 = vector.shape_cast %47 : vector<8x1xi1> to vector<8x1xi1>
    %50 = vector.broadcast %49 : vector<8x1xi1> to vector<8x128xi1>
    %51 = arith.select %50, %48, %38 : vector<8x128xi1>, vector<8x128xf32>
    %52 = arith.mulf %51, %51 : vector<8x128xf32>
    %cst_21 = arith.constant dense<0.000000e+00> : vector<8xf32>
    %53 = vector.multi_reduction <add>, %52, %cst_21 [1] : vector<8x128xf32> to vector<8xf32>
    %54 = vector.shape_cast %53 : vector<8xf32> to vector<8x1xf32>
    %55 = arith.mulf %2, %2 : vector<1x128xf32>
    %cst_22 = arith.constant dense<0.000000e+00> : vector<1xf32>
    %56 = vector.multi_reduction <add>, %55, %cst_22 [1] : vector<1x128xf32> to vector<1xf32>
    %57 = vector.shape_cast %56 : vector<1xf32> to vector<1x1xf32>
    %58 = vector.broadcast %2 : vector<1x128xf32> to vector<8x128xf32>
    %59 = arith.mulf %51, %58 : vector<8x128xf32>
    %cst_23 = arith.constant dense<0.000000e+00> : vector<8xf32>
    %60 = vector.multi_reduction <add>, %59, %cst_23 [1] : vector<8x128xf32> to vector<8xf32>
    %61 = vector.shape_cast %60 : vector<8xf32> to vector<8x1xf32>
    %cst_24 = arith.constant 2.000000e+00 : f32
    %62 = vector.broadcast %cst_24 : f32 to vector<8x1xf32>
    %63 = arith.mulf %62, %61 : vector<8x1xf32>
    %cst_25 = arith.constant 1.000000e+00 : f32
    %64 = vector.broadcast %cst_25 : f32 to vector<8x1xf32>
    %65 = arith.addf %64, %63 : vector<8x1xf32>
    %66 = vector.broadcast %57 : vector<1x1xf32> to vector<8x1xf32>
    %67 = arith.addf %65, %66 : vector<8x1xf32>
    %68 = vector.broadcast %67 : vector<8x1xf32> to vector<8x128xf32>
    %69 = arith.mulf %68, %51 : vector<8x128xf32>
    %cst_26 = arith.constant 1.000000e+00 : f32
    %70 = vector.broadcast %cst_26 : f32 to vector<8x1xf32>
    %71 = arith.subf %70, %54 : vector<8x1xf32>
    %72 = vector.broadcast %71 : vector<8x1xf32> to vector<8x128xf32>
    %73 = vector.broadcast %2 : vector<1x128xf32> to vector<8x128xf32>
    %74 = arith.mulf %72, %73 : vector<8x128xf32>
    %75 = arith.addf %69, %74 : vector<8x128xf32>
    %cst_27 = arith.constant 2.000000e+00 : f32
    %76 = vector.broadcast %cst_27 : f32 to vector<8x1xf32>
    %77 = arith.mulf %76, %61 : vector<8x1xf32>
    %cst_28 = arith.constant 1.000000e+00 : f32
    %78 = vector.broadcast %cst_28 : f32 to vector<8x1xf32>
    %79 = arith.addf %78, %77 : vector<8x1xf32>
    %80 = vector.broadcast %57 : vector<1x1xf32> to vector<8x1xf32>
    %81 = arith.mulf %54, %80 : vector<8x1xf32>
    %82 = arith.addf %79, %81 : vector<8x1xf32>
    %cst_29 = arith.constant 1.000000e-15 : f32
    %83 = vector.broadcast %cst_29 : f32 to vector<8x1xf32>
    %84 = arith.maximumf %82, %83 : vector<8x1xf32>
    %85 = tpu.reciprocal %84 {approx = true} : vector<8x1xf32> -> vector<8x1xf32>
    %86 = vector.broadcast %85 : vector<8x1xf32> to vector<8x128xf32>
    %87 = arith.mulf %75, %86 : vector<8x128xf32>
    %88 = arith.mulf %87, %87 : vector<8x128xf32>
    %cst_30 = arith.constant dense<0.000000e+00> : vector<8xf32>
    %89 = vector.multi_reduction <add>, %88, %cst_30 [1] : vector<8x128xf32> to vector<8xf32>
    %90 = vector.shape_cast %89 : vector<8xf32> to vector<8x1xf32>
    %91 = math.sqrt %90 : vector<8x1xf32>
    %cst_31 = arith.constant 1.000000e-15 : f32
    %92 = vector.broadcast %cst_31 : f32 to vector<8x1xf32>
    %93 = arith.maximumf %91, %92 : vector<8x1xf32>
    %cst_32 = arith.constant 0.995999991 : f32
    %94 = vector.broadcast %cst_32 : f32 to vector<8x1xf32>
    %95 = arith.cmpf ogt, %93, %94 : vector<8x1xf32>
    %96 = tpu.reciprocal %93 {approx = true} : vector<8x1xf32> -> vector<8x1xf32>
    %cst_33 = arith.constant 0.995999991 : f32
    %97 = vector.broadcast %cst_33 : f32 to vector<8x1xf32>
    %98 = arith.mulf %97, %96 : vector<8x1xf32>
    %cst_34 = arith.constant 1.000000e+00 : f32
    %99 = vector.broadcast %cst_34 : f32 to vector<8x1xf32>
    %100 = arith.select %95, %98, %99 : vector<8x1xi1>, vector<8x1xf32>
    %101 = vector.broadcast %100 : vector<8x1xf32> to vector<8x128xf32>
    %102 = arith.mulf %87, %101 : vector<8x128xf32>
    %103 = arith.mulf %102, %102 : vector<8x128xf32>
    %cst_35 = arith.constant dense<0.000000e+00> : vector<8xf32>
    %104 = vector.multi_reduction <add>, %103, %cst_35 [1] : vector<8x128xf32> to vector<8xf32>
    %105 = vector.shape_cast %104 : vector<8xf32> to vector<8x1xf32>
    %106 = math.sqrt %105 : vector<8x1xf32>
    %cst_36 = arith.constant 1.000000e-15 : f32
    %107 = vector.broadcast %cst_36 : f32 to vector<8x1xf32>
    %108 = arith.maximumf %106, %107 : vector<8x1xf32>
    %cst_37 = arith.constant -0.99999988 : f32
    %cst_38 = arith.constant 0.99999988 : f32
    %109 = vector.broadcast %cst_37 : f32 to vector<8x1xf32>
    %110 = arith.maximumf %109, %108 : vector<8x1xf32>
    %111 = vector.broadcast %cst_38 : f32 to vector<8x1xf32>
    %112 = arith.minimumf %111, %110 : vector<8x1xf32>
    %cst_39 = arith.constant 1.000000e+00 : f32
    %113 = vector.broadcast %cst_39 : f32 to vector<8x1xf32>
    %114 = arith.addf %113, %112 : vector<8x1xf32>
    %cst_40 = arith.constant 1.000000e+00 : f32
    %115 = vector.broadcast %cst_40 : f32 to vector<8x1xf32>
    %116 = arith.subf %115, %112 : vector<8x1xf32>
    %117 = tpu.reciprocal %116 {approx = true} : vector<8x1xf32> -> vector<8x1xf32>
    %118 = arith.mulf %114, %117 : vector<8x1xf32>
    %119 = math.log %118 : vector<8x1xf32>
    %cst_41 = arith.constant 5.000000e-01 : f32
    %120 = vector.broadcast %cst_41 : f32 to vector<8x1xf32>
    %121 = arith.mulf %120, %119 : vector<8x1xf32>
    %122 = tpu.reciprocal %108 {approx = true} : vector<8x1xf32> -> vector<8x1xf32>
    %123 = arith.mulf %121, %122 : vector<8x1xf32>
    %124 = vector.broadcast %123 : vector<8x1xf32> to vector<8x128xf32>
    %125 = arith.mulf %124, %102 : vector<8x128xf32>
    %cst_42 = arith.constant 0.000000e+00 : f32
    %126 = vector.broadcast %cst_42 : f32 to vector<8x128xf32>
    %127 = arith.maximumf %125, %126 : vector<8x128xf32>
    %128 = arith.mulf %127, %127 : vector<8x128xf32>
    %cst_43 = arith.constant dense<0.000000e+00> : vector<8xf32>
    %129 = vector.multi_reduction <add>, %128, %cst_43 [1] : vector<8x128xf32> to vector<8xf32>
    %130 = vector.shape_cast %129 : vector<8xf32> to vector<8x1xf32>
    %131 = math.sqrt %130 : vector<8x1xf32>
    %cst_44 = arith.constant 1.000000e-15 : f32
    %132 = vector.broadcast %cst_44 : f32 to vector<8x1xf32>
    %133 = arith.maximumf %131, %132 : vector<8x1xf32>
    %134 = math.tanh %133 : vector<8x1xf32>
    %cst_45 = arith.constant 0.995999991 : f32
    %135 = vector.broadcast %cst_45 : f32 to vector<8x1xf32>
    %136 = arith.minimumf %134, %135 : vector<8x1xf32>
    %137 = tpu.reciprocal %133 {approx = true} : vector<8x1xf32> -> vector<8x1xf32>
    %138 = arith.mulf %136, %137 : vector<8x1xf32>
    %139 = vector.broadcast %138 : vector<8x1xf32> to vector<8x128xf32>
    %140 = arith.mulf %127, %139 : vector<8x128xf32>
    %c0_46 = arith.constant 0 : index
    %c0_47 = arith.constant 0 : index
    %141 = vector.load %arg4[%c0_46, %c0_47] : memref<128x128xf32, #tpu.memory_space<vmem>>, vector<128x128xf32>
    %c0_48 = arith.constant 0 : index
    %c0_49 = arith.constant 0 : index
    %142 = vector.load %arg5[%c0_48, %c0_49] : memref<1x128xf32, #tpu.memory_space<vmem>>, vector<1x128xf32>
    %143 = arith.mulf %140, %140 : vector<8x128xf32>
    %cst_50 = arith.constant dense<0.000000e+00> : vector<8xf32>
    %144 = vector.multi_reduction <add>, %143, %cst_50 [1] : vector<8x128xf32> to vector<8xf32>
    %145 = vector.shape_cast %144 : vector<8xf32> to vector<8x1xf32>
    %146 = math.sqrt %145 : vector<8x1xf32>
    %cst_51 = arith.constant 1.000000e-15 : f32
    %147 = vector.broadcast %cst_51 : f32 to vector<8x1xf32>
    %148 = arith.maximumf %146, %147 : vector<8x1xf32>
    %cst_52 = arith.constant dense<0.000000e+00> : vector<8x128xf32>
    %149 = tpu.matmul %140, %141, %cst_52 {dimension_numbers = #tpu.dot_dimension_numbers<[1], [0], [0], [1], [0, 0, 1, 1], [], []>} : vector<8x128xf32>, vector<128x128xf32>, vector<8x128xf32> -> vector<8x128xf32>
    %150 = arith.mulf %149, %149 : vector<8x128xf32>
    %cst_53 = arith.constant dense<0.000000e+00> : vector<8xf32>
    %151 = vector.multi_reduction <add>, %150, %cst_53 [1] : vector<8x128xf32> to vector<8xf32>
    %152 = vector.shape_cast %151 : vector<8xf32> to vector<8x1xf32>
    %153 = math.sqrt %152 : vector<8x1xf32>
    %cst_54 = arith.constant 1.000000e-15 : f32
    %154 = vector.broadcast %cst_54 : f32 to vector<8x1xf32>
    %155 = arith.maximumf %153, %154 : vector<8x1xf32>
    %156 = tpu.reciprocal %148 {approx = true} : vector<8x1xf32> -> vector<8x1xf32>
    %157 = arith.mulf %155, %156 : vector<8x1xf32>
    %cst_55 = arith.constant -0.99999988 : f32
    %cst_56 = arith.constant 0.99999988 : f32
    %158 = vector.broadcast %cst_55 : f32 to vector<8x1xf32>
    %159 = arith.maximumf %158, %148 : vector<8x1xf32>
    %160 = vector.broadcast %cst_56 : f32 to vector<8x1xf32>
    %161 = arith.minimumf %160, %159 : vector<8x1xf32>
    %cst_57 = arith.constant 1.000000e+00 : f32
    %162 = vector.broadcast %cst_57 : f32 to vector<8x1xf32>
    %163 = arith.addf %162, %161 : vector<8x1xf32>
    %cst_58 = arith.constant 1.000000e+00 : f32
    %164 = vector.broadcast %cst_58 : f32 to vector<8x1xf32>
    %165 = arith.subf %164, %161 : vector<8x1xf32>
    %166 = tpu.reciprocal %165 {approx = true} : vector<8x1xf32> -> vector<8x1xf32>
    %167 = arith.mulf %163, %166 : vector<8x1xf32>
    %168 = math.log %167 : vector<8x1xf32>
    %cst_59 = arith.constant 5.000000e-01 : f32
    %169 = vector.broadcast %cst_59 : f32 to vector<8x1xf32>
    %170 = arith.mulf %169, %168 : vector<8x1xf32>
    %171 = arith.mulf %157, %170 : vector<8x1xf32>
    %172 = math.tanh %171 : vector<8x1xf32>
    %cst_60 = arith.constant 0.995999991 : f32
    %173 = vector.broadcast %cst_60 : f32 to vector<8x1xf32>
    %174 = arith.minimumf %172, %173 : vector<8x1xf32>
    %175 = tpu.reciprocal %155 {approx = true} : vector<8x1xf32> -> vector<8x1xf32>
    %176 = arith.mulf %174, %175 : vector<8x1xf32>
    %177 = vector.broadcast %176 : vector<8x1xf32> to vector<8x128xf32>
    %178 = arith.mulf %149, %177 : vector<8x128xf32>
    %cst_61 = arith.constant 0.000000e+00 : f32
    %179 = vector.broadcast %cst_61 : f32 to vector<8x128xf32>
    %180 = arith.cmpf oeq, %149, %179 : vector<8x128xf32>
    %cst_62 = arith.constant 1.000000e+00 : f32
    %cst_63 = arith.constant 0.000000e+00 : f32
    %181 = vector.broadcast %cst_62 : f32 to vector<8x128xf32>
    %182 = vector.broadcast %cst_63 : f32 to vector<8x128xf32>
    %183 = arith.select %180, %181, %182 : vector<8x128xi1>, vector<8x128xf32>
    %cst_64 = arith.constant dense<0x7F800000> : vector<8xf32>
    %184 = vector.multi_reduction <minimumf>, %183, %cst_64 [1] : vector<8x128xf32> to vector<8xf32>
    %cst_65 = arith.constant 0.000000e+00 : f32
    %185 = vector.broadcast %cst_65 : f32 to vector<8xf32>
    %186 = arith.cmpf ogt, %184, %185 : vector<8xf32>
    %187 = vector.shape_cast %186 : vector<8xi1> to vector<8x1xi1>
    %cst_66 = arith.constant 0.000000e+00 : f32
    %188 = vector.broadcast %cst_66 : f32 to vector<8x128xf32>
    %189 = vector.shape_cast %187 : vector<8x1xi1> to vector<8x1xi1>
    %190 = vector.broadcast %189 : vector<8x1xi1> to vector<8x128xi1>
    %191 = arith.select %190, %188, %178 : vector<8x128xi1>, vector<8x128xf32>
    %192 = arith.mulf %191, %191 : vector<8x128xf32>
    %cst_67 = arith.constant dense<0.000000e+00> : vector<8xf32>
    %193 = vector.multi_reduction <add>, %192, %cst_67 [1] : vector<8x128xf32> to vector<8xf32>
    %194 = vector.shape_cast %193 : vector<8xf32> to vector<8x1xf32>
    %195 = arith.mulf %142, %142 : vector<1x128xf32>
    %cst_68 = arith.constant dense<0.000000e+00> : vector<1xf32>
    %196 = vector.multi_reduction <add>, %195, %cst_68 [1] : vector<1x128xf32> to vector<1xf32>
    %197 = vector.shape_cast %196 : vector<1xf32> to vector<1x1xf32>
    %198 = vector.broadcast %142 : vector<1x128xf32> to vector<8x128xf32>
    %199 = arith.mulf %191, %198 : vector<8x128xf32>
    %cst_69 = arith.constant dense<0.000000e+00> : vector<8xf32>
    %200 = vector.multi_reduction <add>, %199, %cst_69 [1] : vector<8x128xf32> to vector<8xf32>
    %201 = vector.shape_cast %200 : vector<8xf32> to vector<8x1xf32>
    %cst_70 = arith.constant 2.000000e+00 : f32
    %202 = vector.broadcast %cst_70 : f32 to vector<8x1xf32>
    %203 = arith.mulf %202, %201 : vector<8x1xf32>
    %cst_71 = arith.constant 1.000000e+00 : f32
    %204 = vector.broadcast %cst_71 : f32 to vector<8x1xf32>
    %205 = arith.addf %204, %203 : vector<8x1xf32>
    %206 = vector.broadcast %197 : vector<1x1xf32> to vector<8x1xf32>
    %207 = arith.addf %205, %206 : vector<8x1xf32>
    %208 = vector.broadcast %207 : vector<8x1xf32> to vector<8x128xf32>
    %209 = arith.mulf %208, %191 : vector<8x128xf32>
    %cst_72 = arith.constant 1.000000e+00 : f32
    %210 = vector.broadcast %cst_72 : f32 to vector<8x1xf32>
    %211 = arith.subf %210, %194 : vector<8x1xf32>
    %212 = vector.broadcast %211 : vector<8x1xf32> to vector<8x128xf32>
    %213 = vector.broadcast %142 : vector<1x128xf32> to vector<8x128xf32>
    %214 = arith.mulf %212, %213 : vector<8x128xf32>
    %215 = arith.addf %209, %214 : vector<8x128xf32>
    %cst_73 = arith.constant 2.000000e+00 : f32
    %216 = vector.broadcast %cst_73 : f32 to vector<8x1xf32>
    %217 = arith.mulf %216, %201 : vector<8x1xf32>
    %cst_74 = arith.constant 1.000000e+00 : f32
    %218 = vector.broadcast %cst_74 : f32 to vector<8x1xf32>
    %219 = arith.addf %218, %217 : vector<8x1xf32>
    %220 = vector.broadcast %197 : vector<1x1xf32> to vector<8x1xf32>
    %221 = arith.mulf %194, %220 : vector<8x1xf32>
    %222 = arith.addf %219, %221 : vector<8x1xf32>
    %cst_75 = arith.constant 1.000000e-15 : f32
    %223 = vector.broadcast %cst_75 : f32 to vector<8x1xf32>
    %224 = arith.maximumf %222, %223 : vector<8x1xf32>
    %225 = tpu.reciprocal %224 {approx = true} : vector<8x1xf32> -> vector<8x1xf32>
    %226 = vector.broadcast %225 : vector<8x1xf32> to vector<8x128xf32>
    %227 = arith.mulf %215, %226 : vector<8x128xf32>
    %228 = arith.mulf %227, %227 : vector<8x128xf32>
    %cst_76 = arith.constant dense<0.000000e+00> : vector<8xf32>
    %229 = vector.multi_reduction <add>, %228, %cst_76 [1] : vector<8x128xf32> to vector<8xf32>
    %230 = vector.shape_cast %229 : vector<8xf32> to vector<8x1xf32>
    %231 = math.sqrt %230 : vector<8x1xf32>
    %cst_77 = arith.constant 1.000000e-15 : f32
    %232 = vector.broadcast %cst_77 : f32 to vector<8x1xf32>
    %233 = arith.maximumf %231, %232 : vector<8x1xf32>
    %cst_78 = arith.constant 0.995999991 : f32
    %234 = vector.broadcast %cst_78 : f32 to vector<8x1xf32>
    %235 = arith.cmpf ogt, %233, %234 : vector<8x1xf32>
    %236 = tpu.reciprocal %233 {approx = true} : vector<8x1xf32> -> vector<8x1xf32>
    %cst_79 = arith.constant 0.995999991 : f32
    %237 = vector.broadcast %cst_79 : f32 to vector<8x1xf32>
    %238 = arith.mulf %237, %236 : vector<8x1xf32>
    %cst_80 = arith.constant 1.000000e+00 : f32
    %239 = vector.broadcast %cst_80 : f32 to vector<8x1xf32>
    %240 = arith.select %235, %238, %239 : vector<8x1xi1>, vector<8x1xf32>
    %241 = vector.broadcast %240 : vector<8x1xf32> to vector<8x128xf32>
    %242 = arith.mulf %227, %241 : vector<8x128xf32>
    %243 = arith.mulf %242, %242 : vector<8x128xf32>
    %cst_81 = arith.constant dense<0.000000e+00> : vector<8xf32>
    %244 = vector.multi_reduction <add>, %243, %cst_81 [1] : vector<8x128xf32> to vector<8xf32>
    %245 = vector.shape_cast %244 : vector<8xf32> to vector<8x1xf32>
    %246 = math.sqrt %245 : vector<8x1xf32>
    %cst_82 = arith.constant 1.000000e-15 : f32
    %247 = vector.broadcast %cst_82 : f32 to vector<8x1xf32>
    %248 = arith.maximumf %246, %247 : vector<8x1xf32>
    %cst_83 = arith.constant -0.99999988 : f32
    %cst_84 = arith.constant 0.99999988 : f32
    %249 = vector.broadcast %cst_83 : f32 to vector<8x1xf32>
    %250 = arith.maximumf %249, %248 : vector<8x1xf32>
    %251 = vector.broadcast %cst_84 : f32 to vector<8x1xf32>
    %252 = arith.minimumf %251, %250 : vector<8x1xf32>
    %cst_85 = arith.constant 1.000000e+00 : f32
    %253 = vector.broadcast %cst_85 : f32 to vector<8x1xf32>
    %254 = arith.addf %253, %252 : vector<8x1xf32>
    %cst_86 = arith.constant 1.000000e+00 : f32
    %255 = vector.broadcast %cst_86 : f32 to vector<8x1xf32>
    %256 = arith.subf %255, %252 : vector<8x1xf32>
    %257 = tpu.reciprocal %256 {approx = true} : vector<8x1xf32> -> vector<8x1xf32>
    %258 = arith.mulf %254, %257 : vector<8x1xf32>
    %259 = math.log %258 : vector<8x1xf32>
    %cst_87 = arith.constant 5.000000e-01 : f32
    %260 = vector.broadcast %cst_87 : f32 to vector<8x1xf32>
    %261 = arith.mulf %260, %259 : vector<8x1xf32>
    %262 = tpu.reciprocal %248 {approx = true} : vector<8x1xf32> -> vector<8x1xf32>
    %263 = arith.mulf %261, %262 : vector<8x1xf32>
    %264 = vector.broadcast %263 : vector<8x1xf32> to vector<8x128xf32>
    %265 = arith.mulf %264, %242 : vector<8x128xf32>
    %cst_88 = arith.constant 0.000000e+00 : f32
    %266 = vector.broadcast %cst_88 : f32 to vector<8x128xf32>
    %267 = arith.maximumf %265, %266 : vector<8x128xf32>
    %268 = arith.mulf %267, %267 : vector<8x128xf32>
    %cst_89 = arith.constant dense<0.000000e+00> : vector<8xf32>
    %269 = vector.multi_reduction <add>, %268, %cst_89 [1] : vector<8x128xf32> to vector<8xf32>
    %270 = vector.shape_cast %269 : vector<8xf32> to vector<8x1xf32>
    %271 = math.sqrt %270 : vector<8x1xf32>
    %cst_90 = arith.constant 1.000000e-15 : f32
    %272 = vector.broadcast %cst_90 : f32 to vector<8x1xf32>
    %273 = arith.maximumf %271, %272 : vector<8x1xf32>
    %274 = math.tanh %273 : vector<8x1xf32>
    %cst_91 = arith.constant 0.995999991 : f32
    %275 = vector.broadcast %cst_91 : f32 to vector<8x1xf32>
    %276 = arith.minimumf %274, %275 : vector<8x1xf32>
    %277 = tpu.reciprocal %273 {approx = true} : vector<8x1xf32> -> vector<8x1xf32>
    %278 = arith.mulf %276, %277 : vector<8x1xf32>
    %279 = vector.broadcast %278 : vector<8x1xf32> to vector<8x128xf32>
    %280 = arith.mulf %267, %279 : vector<8x128xf32>
    %c0_92 = arith.constant 0 : index
    %c0_93 = arith.constant 0 : index
    %281 = vector.load %arg6[%c0_92, %c0_93] : memref<128x128xf32, #tpu.memory_space<vmem>>, vector<128x128xf32>
    %c0_94 = arith.constant 0 : index
    %c0_95 = arith.constant 0 : index
    %282 = vector.load %arg7[%c0_94, %c0_95] : memref<1x128xf32, #tpu.memory_space<vmem>>, vector<1x128xf32>
    %283 = arith.mulf %280, %280 : vector<8x128xf32>
    %cst_96 = arith.constant dense<0.000000e+00> : vector<8xf32>
    %284 = vector.multi_reduction <add>, %283, %cst_96 [1] : vector<8x128xf32> to vector<8xf32>
    %285 = vector.shape_cast %284 : vector<8xf32> to vector<8x1xf32>
    %286 = math.sqrt %285 : vector<8x1xf32>
    %cst_97 = arith.constant 1.000000e-15 : f32
    %287 = vector.broadcast %cst_97 : f32 to vector<8x1xf32>
    %288 = arith.maximumf %286, %287 : vector<8x1xf32>
    %cst_98 = arith.constant dense<0.000000e+00> : vector<8x128xf32>
    %289 = tpu.matmul %280, %281, %cst_98 {dimension_numbers = #tpu.dot_dimension_numbers<[1], [0], [0], [1], [0, 0, 1, 1], [], []>} : vector<8x128xf32>, vector<128x128xf32>, vector<8x128xf32> -> vector<8x128xf32>
    %290 = arith.mulf %289, %289 : vector<8x128xf32>
    %cst_99 = arith.constant dense<0.000000e+00> : vector<8xf32>
    %291 = vector.multi_reduction <add>, %290, %cst_99 [1] : vector<8x128xf32> to vector<8xf32>
    %292 = vector.shape_cast %291 : vector<8xf32> to vector<8x1xf32>
    %293 = math.sqrt %292 : vector<8x1xf32>
    %cst_100 = arith.constant 1.000000e-15 : f32
    %294 = vector.broadcast %cst_100 : f32 to vector<8x1xf32>
    %295 = arith.maximumf %293, %294 : vector<8x1xf32>
    %296 = tpu.reciprocal %288 {approx = true} : vector<8x1xf32> -> vector<8x1xf32>
    %297 = arith.mulf %295, %296 : vector<8x1xf32>
    %cst_101 = arith.constant -0.99999988 : f32
    %cst_102 = arith.constant 0.99999988 : f32
    %298 = vector.broadcast %cst_101 : f32 to vector<8x1xf32>
    %299 = arith.maximumf %298, %288 : vector<8x1xf32>
    %300 = vector.broadcast %cst_102 : f32 to vector<8x1xf32>
    %301 = arith.minimumf %300, %299 : vector<8x1xf32>
    %cst_103 = arith.constant 1.000000e+00 : f32
    %302 = vector.broadcast %cst_103 : f32 to vector<8x1xf32>
    %303 = arith.addf %302, %301 : vector<8x1xf32>
    %cst_104 = arith.constant 1.000000e+00 : f32
    %304 = vector.broadcast %cst_104 : f32 to vector<8x1xf32>
    %305 = arith.subf %304, %301 : vector<8x1xf32>
    %306 = tpu.reciprocal %305 {approx = true} : vector<8x1xf32> -> vector<8x1xf32>
    %307 = arith.mulf %303, %306 : vector<8x1xf32>
    %308 = math.log %307 : vector<8x1xf32>
    %cst_105 = arith.constant 5.000000e-01 : f32
    %309 = vector.broadcast %cst_105 : f32 to vector<8x1xf32>
    %310 = arith.mulf %309, %308 : vector<8x1xf32>
    %311 = arith.mulf %297, %310 : vector<8x1xf32>
    %312 = math.tanh %311 : vector<8x1xf32>
    %cst_106 = arith.constant 0.995999991 : f32
    %313 = vector.broadcast %cst_106 : f32 to vector<8x1xf32>
    %314 = arith.minimumf %312, %313 : vector<8x1xf32>
    %315 = tpu.reciprocal %295 {approx = true} : vector<8x1xf32> -> vector<8x1xf32>
    %316 = arith.mulf %314, %315 : vector<8x1xf32>
    %317 = vector.broadcast %316 : vector<8x1xf32> to vector<8x128xf32>
    %318 = arith.mulf %289, %317 : vector<8x128xf32>
    %cst_107 = arith.constant 0.000000e+00 : f32
    %319 = vector.broadcast %cst_107 : f32 to vector<8x128xf32>
    %320 = arith.cmpf oeq, %289, %319 : vector<8x128xf32>
    %cst_108 = arith.constant 1.000000e+00 : f32
    %cst_109 = arith.constant 0.000000e+00 : f32
    %321 = vector.broadcast %cst_108 : f32 to vector<8x128xf32>
    %322 = vector.broadcast %cst_109 : f32 to vector<8x128xf32>
    %323 = arith.select %320, %321, %322 : vector<8x128xi1>, vector<8x128xf32>
    %cst_110 = arith.constant dense<0x7F800000> : vector<8xf32>
    %324 = vector.multi_reduction <minimumf>, %323, %cst_110 [1] : vector<8x128xf32> to vector<8xf32>
    %cst_111 = arith.constant 0.000000e+00 : f32
    %325 = vector.broadcast %cst_111 : f32 to vector<8xf32>
    %326 = arith.cmpf ogt, %324, %325 : vector<8xf32>
    %327 = vector.shape_cast %326 : vector<8xi1> to vector<8x1xi1>
    %cst_112 = arith.constant 0.000000e+00 : f32
    %328 = vector.broadcast %cst_112 : f32 to vector<8x128xf32>
    %329 = vector.shape_cast %327 : vector<8x1xi1> to vector<8x1xi1>
    %330 = vector.broadcast %329 : vector<8x1xi1> to vector<8x128xi1>
    %331 = arith.select %330, %328, %318 : vector<8x128xi1>, vector<8x128xf32>
    %332 = arith.mulf %331, %331 : vector<8x128xf32>
    %cst_113 = arith.constant dense<0.000000e+00> : vector<8xf32>
    %333 = vector.multi_reduction <add>, %332, %cst_113 [1] : vector<8x128xf32> to vector<8xf32>
    %334 = vector.shape_cast %333 : vector<8xf32> to vector<8x1xf32>
    %335 = arith.mulf %282, %282 : vector<1x128xf32>
    %cst_114 = arith.constant dense<0.000000e+00> : vector<1xf32>
    %336 = vector.multi_reduction <add>, %335, %cst_114 [1] : vector<1x128xf32> to vector<1xf32>
    %337 = vector.shape_cast %336 : vector<1xf32> to vector<1x1xf32>
    %338 = vector.broadcast %282 : vector<1x128xf32> to vector<8x128xf32>
    %339 = arith.mulf %331, %338 : vector<8x128xf32>
    %cst_115 = arith.constant dense<0.000000e+00> : vector<8xf32>
    %340 = vector.multi_reduction <add>, %339, %cst_115 [1] : vector<8x128xf32> to vector<8xf32>
    %341 = vector.shape_cast %340 : vector<8xf32> to vector<8x1xf32>
    %cst_116 = arith.constant 2.000000e+00 : f32
    %342 = vector.broadcast %cst_116 : f32 to vector<8x1xf32>
    %343 = arith.mulf %342, %341 : vector<8x1xf32>
    %cst_117 = arith.constant 1.000000e+00 : f32
    %344 = vector.broadcast %cst_117 : f32 to vector<8x1xf32>
    %345 = arith.addf %344, %343 : vector<8x1xf32>
    %346 = vector.broadcast %337 : vector<1x1xf32> to vector<8x1xf32>
    %347 = arith.addf %345, %346 : vector<8x1xf32>
    %348 = vector.broadcast %347 : vector<8x1xf32> to vector<8x128xf32>
    %349 = arith.mulf %348, %331 : vector<8x128xf32>
    %cst_118 = arith.constant 1.000000e+00 : f32
    %350 = vector.broadcast %cst_118 : f32 to vector<8x1xf32>
    %351 = arith.subf %350, %334 : vector<8x1xf32>
    %352 = vector.broadcast %351 : vector<8x1xf32> to vector<8x128xf32>
    %353 = vector.broadcast %282 : vector<1x128xf32> to vector<8x128xf32>
    %354 = arith.mulf %352, %353 : vector<8x128xf32>
    %355 = arith.addf %349, %354 : vector<8x128xf32>
    %cst_119 = arith.constant 2.000000e+00 : f32
    %356 = vector.broadcast %cst_119 : f32 to vector<8x1xf32>
    %357 = arith.mulf %356, %341 : vector<8x1xf32>
    %cst_120 = arith.constant 1.000000e+00 : f32
    %358 = vector.broadcast %cst_120 : f32 to vector<8x1xf32>
    %359 = arith.addf %358, %357 : vector<8x1xf32>
    %360 = vector.broadcast %337 : vector<1x1xf32> to vector<8x1xf32>
    %361 = arith.mulf %334, %360 : vector<8x1xf32>
    %362 = arith.addf %359, %361 : vector<8x1xf32>
    %cst_121 = arith.constant 1.000000e-15 : f32
    %363 = vector.broadcast %cst_121 : f32 to vector<8x1xf32>
    %364 = arith.maximumf %362, %363 : vector<8x1xf32>
    %365 = tpu.reciprocal %364 {approx = true} : vector<8x1xf32> -> vector<8x1xf32>
    %366 = vector.broadcast %365 : vector<8x1xf32> to vector<8x128xf32>
    %367 = arith.mulf %355, %366 : vector<8x128xf32>
    %368 = arith.mulf %367, %367 : vector<8x128xf32>
    %cst_122 = arith.constant dense<0.000000e+00> : vector<8xf32>
    %369 = vector.multi_reduction <add>, %368, %cst_122 [1] : vector<8x128xf32> to vector<8xf32>
    %370 = vector.shape_cast %369 : vector<8xf32> to vector<8x1xf32>
    %371 = math.sqrt %370 : vector<8x1xf32>
    %cst_123 = arith.constant 1.000000e-15 : f32
    %372 = vector.broadcast %cst_123 : f32 to vector<8x1xf32>
    %373 = arith.maximumf %371, %372 : vector<8x1xf32>
    %cst_124 = arith.constant 0.995999991 : f32
    %374 = vector.broadcast %cst_124 : f32 to vector<8x1xf32>
    %375 = arith.cmpf ogt, %373, %374 : vector<8x1xf32>
    %376 = tpu.reciprocal %373 {approx = true} : vector<8x1xf32> -> vector<8x1xf32>
    %cst_125 = arith.constant 0.995999991 : f32
    %377 = vector.broadcast %cst_125 : f32 to vector<8x1xf32>
    %378 = arith.mulf %377, %376 : vector<8x1xf32>
    %cst_126 = arith.constant 1.000000e+00 : f32
    %379 = vector.broadcast %cst_126 : f32 to vector<8x1xf32>
    %380 = arith.select %375, %378, %379 : vector<8x1xi1>, vector<8x1xf32>
    %381 = vector.broadcast %380 : vector<8x1xf32> to vector<8x128xf32>
    %382 = arith.mulf %367, %381 : vector<8x128xf32>
    %c0_127 = arith.constant 0 : index
    %c0_128 = arith.constant 0 : index
    %383 = vector.load %arg8[%c0_127, %c0_128] : memref<8x128xf32, #tpu.memory_space<vmem>>, vector<8x128xf32>
    tpu.vector_store %arg8[%c0_127, %c0_128], %382 {strides = array<i32>} : memref<8x128xf32, #tpu.memory_space<vmem>>, vector<8x128xf32>,
    return
  }
  func.func @transform_0(%arg0: i32) -> (i32, i32) {
    %c0_i32 = arith.constant 0 : i32
    %c0_i32_0 = arith.constant 0 : i32
    return %arg0, %c0_i32 : i32, i32
  }
  func.func @transform_1(%arg0: i32) -> (i32, i32) {
    %c0_i32 = arith.constant 0 : i32
    %c0_i32_0 = arith.constant 0 : i32
    %c0_i32_1 = arith.constant 0 : i32
    return %c0_i32, %c0_i32_0 : i32, i32
  }
  func.func @transform_2(%arg0: i32) -> (i32, i32) {
    %c0_i32 = arith.constant 0 : i32
    %c0_i32_0 = arith.constant 0 : i32
    %c0_i32_1 = arith.constant 0 : i32
    return %c0_i32, %c0_i32_0 : i32, i32
  }
  func.func @transform_3(%arg0: i32) -> (i32, i32) {
    %c0_i32 = arith.constant 0 : i32
    %c0_i32_0 = arith.constant 0 : i32
    %c0_i32_1 = arith.constant 0 : i32
    return %c0_i32, %c0_i32_0 : i32, i32
  }
  func.func @transform_4(%arg0: i32) -> (i32, i32) {
    %c0_i32 = arith.constant 0 : i32
    %c0_i32_0 = arith.constant 0 : i32
    %c0_i32_1 = arith.constant 0 : i32
    return %c0_i32, %c0_i32_0 : i32, i32
  }
  func.func @transform_5(%arg0: i32) -> (i32, i32) {
    %c0_i32 = arith.constant 0 : i32
    %c0_i32_0 = arith.constant 0 : i32
    %c0_i32_1 = arith.constant 0 : i32
    return %c0_i32, %c0_i32_0 : i32, i32
  }
  func.func @transform_6(%arg0: i32) -> (i32, i32) {
    %c0_i32 = arith.constant 0 : i32
    %c0_i32_0 = arith.constant 0 : i32
    %c0_i32_1 = arith.constant 0 : i32
    return %c0_i32, %c0_i32_0 : i32, i32
  }
  func.func @transform_7(%arg0: i32) -> (i32, i32) {
    %c0_i32 = arith.constant 0 : i32
    %c0_i32_0 = arith.constant 0 : i32
    return %arg0, %c0_i32 : i32, i32
  }
}

</mosaic_0001>

<llo_original>
// kernel: tpu_custom_call.1
$region0: #{tpu_custom_call.1}
  #allocation0 [shape = 'u32[]', space=smem, size = 0x4, offset = 0x4, fixed_abs, tag = 'smem constant byte address 0x4 - core index']
  #allocation1 [shape = 'u32[72,128]{1,0:T(1,128)}', space=vmem, size = 0x9000, scoped, tag = 'internal scratch']
  %s0 = inlined_call_operand.hbm [shape: f32[8,128], index: 0, kind: input, shape index: {}]
  %s1 = inlined_call_operand.hbm [shape: f32[128,128], index: 1, kind: input, shape index: {}]
  %s2 = inlined_call_operand.vmem [shape: f32[1,128], index: 2, kind: input, shape index: {}]
  %s3 = inlined_call_operand.hbm [shape: f32[128,128], index: 3, kind: input, shape index: {}]
  %s4 = inlined_call_operand.vmem [shape: f32[1,128], index: 4, kind: input, shape index: {}]
  %s5 = inlined_call_operand.hbm [shape: f32[128,128], index: 5, kind: input, shape index: {}]
  %s6 = inlined_call_operand.vmem [shape: f32[1,128], index: 6, kind: input, shape index: {}]
  %s7 = inlined_call_operand.hbm [shape: f32[8,128], index: 7, kind: output, shape index: {}]
  %s8 = sld [smem:[#allocation0]]
  $region54: #{tpu_custom_call.1} parent=0
    _
  %s10 = ssub.s32 1, %s8
  %s11 = scalar_select 0, %s10, %s8
  $region1: #{tpu_custom_call.1} parent=0
    #allocation2 [shape = 'u8[4096]{0}', space=vmem, size = 0x1000, scoped, tag = 'input window, operand 0, single buffered']
    #allocation3 [shape = 's32[1]{0}', space=sflag, size = 0x4, scoped, tag = 'scoped memory for tpu_custom_call.1']
    #allocation4 [shape = 's32[1]{0}', space=sflag, size = 0x4, scoped, tag = 'scoped memory for tpu_custom_call.1']
    #allocation5 [shape = 'u8[65536]{0}', space=vmem, size = 0x10000, scoped, tag = 'input window, operand 1, single buffered']
    #allocation6 [shape = 's32[1]{0}', space=sflag, size = 0x4, scoped, tag = 'scoped memory for tpu_custom_call.1']
    #allocation7 [shape = 'u8[65536]{0}', space=vmem, size = 0x10000, scoped, tag = 'input window, operand 3, single buffered']
    #allocation8 [shape = 'u8[65536]{0}', space=vmem, size = 0x10000, scoped, tag = 'input window, operand 5, single buffered']
    #allocation9 [shape = 's32[1]{0}', space=sflag, size = 0x4, scoped, tag = 'scoped memory for tpu_custom_call.1']
    #allocation10 [shape = 'u8[4096]{0}', space=vmem, size = 0x1000, scoped, tag = 'output window, operand 0, single buffered']
    %12 = vsyncpa [#allocation3], 0
    %13 = vsyncpa [#allocation6], 0
    %14 = vsyncpa [#allocation9], 0
    %15 = vsyncpa [#allocation4], 0
    // Predicated region
    $region2: #{tpu_custom_call.1} parent=1 // pred_check
      _
    $region3: #{tpu_custom_call.1} parent=1 // pred_check_branch
      %17 = sbr.rel (0) target = $region5
    $region4: #{tpu_custom_call.1} parent=1 // pred_region
      %19 = vsyncadd [#allocation3], 0
      %s21 = sshll.u32 %s0, 4
      %s22 = int_to_ptr.hbm [resolvable:$true] %s21
      %s23 = sshll.u32 [#allocation2], 4
      %s24 = int_to_ptr.vmem [resolvable:$true] %s23
      %26 = dma.hbm_to_vmem [thread:$0]  %s22, 128, %s24, [#allocation3]
    $region5: #{tpu_custom_call.1} parent=1 // pred_fallthru
      _
    // Predicated region
    $region6: #{tpu_custom_call.1} parent=1 // pred_check
      _
    $region7: #{tpu_custom_call.1} parent=1 // pred_check_branch
      %28 = sbr.rel (0) target = $region9
    $region8: #{tpu_custom_call.1} parent=1 // pred_region
      %30 = vsyncadd [#allocation6], 0
      %s31 = sshll.u32 %s1, 4
      %s32 = int_to_ptr.hbm [resolvable:$true] %s31
      %s33 = sshll.u32 [#allocation5], 4
      %s34 = int_to_ptr.vmem [resolvable:$true] %s33
      %39 = dma.hbm_to_vmem [thread:$0]  %s32, 2048, %s34, [#allocation6], 128, 128, 8
    $region9: #{tpu_custom_call.1} parent=1 // pred_fallthru
      _
    // Predicated region
    $region10: #{tpu_custom_call.1} parent=1 // pred_check
      _
    $region11: #{tpu_custom_call.1} parent=1 // pred_check_branch
      %41 = sbr.rel (0) target = $region13
    $region12: #{tpu_custom_call.1} parent=1 // pred_region
      _
    $region13: #{tpu_custom_call.1} parent=1 // pred_fallthru
      _
    // Predicated region
    $region14: #{tpu_custom_call.1} parent=1 // pred_check
      _
    $region15: #{tpu_custom_call.1} parent=1 // pred_check_branch
      %43 = sbr.rel (0) target = $region17
    $region16: #{tpu_custom_call.1} parent=1 // pred_region
      %45 = vsyncadd [#allocation6], 0
      %s46 = sshll.u32 %s3, 4
      %s47 = int_to_ptr.hbm [resolvable:$true] %s46
      %s48 = sshll.u32 [#allocation7], 4
      %s49 = int_to_ptr.vmem [resolvable:$true] %s48
      %54 = dma.hbm_to_vmem [thread:$0]  %s47, 2048, %s49, [#allocation6], 128, 128, 8
    $region17: #{tpu_custom_call.1} parent=1 // pred_fallthru
      _
    // Predicated region
    $region18: #{tpu_custom_call.1} parent=1 // pred_check
      _
    $region19: #{tpu_custom_call.1} parent=1 // pred_check_branch
      %56 = sbr.rel (0) target = $region21
    $region20: #{tpu_custom_call.1} parent=1 // pred_region
      _
    $region21: #{tpu_custom_call.1} parent=1 // pred_fallthru
      _
    // Predicated region
    $region22: #{tpu_custom_call.1} parent=1 // pred_check
      _
    $region23: #{tpu_custom_call.1} parent=1 // pred_check_branch
      %58 = sbr.rel (0) target = $region25
    $region24: #{tpu_custom_call.1} parent=1 // pred_region
      %60 = vsyncadd [#allocation9], 0
      %s61 = sshll.u32 %s5, 4
      %s62 = int_to_ptr.hbm [resolvable:$true] %s61
      %s63 = sshll.u32 [#allocation8], 4
      %s64 = int_to_ptr.vmem [resolvable:$true] %s63
      %69 = dma.hbm_to_vmem [thread:$0]  %s62, 2048, %s64, [#allocation9], 128, 128, 8
    $region25: #{tpu_custom_call.1} parent=1 // pred_fallthru
      _
    // Predicated region
    $region26: #{tpu_custom_call.1} parent=1 // pred_check
      _
    $region27: #{tpu_custom_call.1} parent=1 // pred_check_branch
      %71 = sbr.rel (0) target = $region29
    $region28: #{tpu_custom_call.1} parent=1 // pred_region
      _
    $region29: #{tpu_custom_call.1} parent=1 // pred_fallthru
      _
    // Predicated region
    $region30: #{tpu_custom_call.1} parent=1 // pred_check
      _
    $region31: #{tpu_custom_call.1} parent=1 // pred_check_branch
      %73 = sbr.rel (0) target = $region33
    $region32: #{tpu_custom_call.1} parent=1 // pred_region
      %75 = dma.done [#allocation3], 128
    $region33: #{tpu_custom_call.1} parent=1 // pred_fallthru
      _
    // Predicated region
    $region34: #{tpu_custom_call.1} parent=1 // pred_check
      _
    $region35: #{tpu_custom_call.1} parent=1 // pred_check_branch
      %77 = sbr.rel (0) target = $region37
    $region36: #{tpu_custom_call.1} parent=1 // pred_region
      %79 = dma.done [#allocation6], 2048
    $region37: #{tpu_custom_call.1} parent=1 // pred_fallthru
      _
    // Predicated region
    $region38: #{tpu_custom_call.1} parent=1 // pred_check
      _
    $region39: #{tpu_custom_call.1} parent=1 // pred_check_branch
      %81 = sbr.rel (0) target = $region41
    $region40: #{tpu_custom_call.1} parent=1 // pred_region
      %83 = dma.done [#allocation6], 2048
    $region41: #{tpu_custom_call.1} parent=1 // pred_fallthru
      _
    // Predicated region
    $region42: #{tpu_custom_call.1} parent=1 // pred_check
      _
    $region43: #{tpu_custom_call.1} parent=1 // pred_check_branch
      %85 = sbr.rel (0) target = $region45
    $region44: #{tpu_custom_call.1} parent=1 // pred_region
      %87 = dma.done [#allocation9], 2048
    $region45: #{tpu_custom_call.1} parent=1 // pred_fallthru
      _
    %v88 = vld [vmem:[#allocation2] sm:$0xff]
    %v89 = vld [vmem:[#allocation5] sm:$0xff]
    %v90 = vld [vmem:[#allocation5 + $0x8] sm:$0xff]
    %v91 = vld [vmem:[#allocation5 + $0x10] sm:$0xff]
    %v92 = vld [vmem:[#allocation5 + $0x18] sm:$0xff]
    %v93 = vld [vmem:[#allocation5 + $0x20] sm:$0xff]
    %v94 = vld [vmem:[#allocation5 + $0x28] sm:$0xff]
    %v95 = vld [vmem:[#allocation5 + $0x30] sm:$0xff]
    %v96 = vld [vmem:[#allocation5 + $0x38] sm:$0xff]
    %v97 = vld [vmem:[#allocation5 + $0x40] sm:$0xff]
    %v98 = vld [vmem:[#allocation5 + $0x48] sm:$0xff]
    %v99 = vld [vmem:[#allocation5 + $0x50] sm:$0xff]
    %v100 = vld [vmem:[#allocation5 + $0x58] sm:$0xff]
    %v101 = vld [vmem:[#allocation5 + $0x60] sm:$0xff]
    %v102 = vld [vmem:[#allocation5 + $0x68] sm:$0xff]
    %v103 = vld [vmem:[#allocation5 + $0x70] sm:$0xff]
    %v104 = vld [vmem:[#allocation5 + $0x78] sm:$0xff]
    %v105 = vld [vmem:[%s2] sm:$0x1]
    %v106 = vmul.f32 %v88, %v88
    %107 = vadd.xlane.f32.xlu0 %v106
    %v108 = vpop.xlane.xlu0 %107
    %v109 = vrsqrt.pop %v108
    %v110 = vmul.f32 %v109, %v108
    %v111 = vmul.f32 %v110, %v109
    %v112 = vmul.f32 0.5, %v111
    %v113 = vsub.f32 1.5, %v112
    %v114 = vmul.f32 %v109, %v113
    %v115 = vmul.f32 %v108, %v114
    %vm116 = vcmp.eq.f32.partialorder %v108, inf
    %v117 = vsel %vm116, %v108, %v115
    %vm118 = vcmp.eq.f32.partialorder %v108, 0.0
    %v119 = vand.u32 %v108, 2147483648
    %v120 = vsel %vm118, %v119, %v117
    %v121 = vmax.f32 %v120, 1e-15
    %122 = vmatpush.msra.mxu0 %v104
    %123 = vmatpush.msra.mxu0 %v103
    %124 = vmatpush.msra.mxu0 %v102
    %125 = vmatpush.msra.mxu0 %v101
    %126 = vmatpush.msra.mxu0 %v100
    %127 = vmatpush.msra.mxu0 %v99
    %128 = vmatpush.msra.mxu0 %v98
    %129 = vmatpush.msra.mxu0 %v97
    %130 = vmatpush.msra.mxu0 %v96
    %131 = vmatpush.msra.mxu0 %v95
    %132 = vmatpush.msra.mxu0 %v94
    %133 = vmatpush.msra.mxu0 %v93
    %134 = vmatpush.msra.mxu0 %v92
    %135 = vmatpush.msra.mxu0 %v91
    %136 = vmatpush.msra.mxu0 %v90
    %137 = vmatpush.msra.mxu0 %v89
    %138 = vmatmul.f32.gmra.mxu0 %v88
    %v139 = vpop.f32.mrf.mxu0
    %v140 = vadd.f32 0.0, %v139
    %141 = vdwg.mxu0
    %v142 = vmul.f32 %v140, %v140
    %143 = vadd.xlane.f32.xlu0 %v142
    %v144 = vpop.xlane.xlu0 %143
    %v145 = vrsqrt.pop %v144
    %v146 = vmul.f32 %v145, %v144
    %v147 = vmul.f32 %v146, %v145
    %v148 = vmul.f32 0.5, %v147
    %v149 = vsub.f32 1.5, %v148
    %v150 = vmul.f32 %v145, %v149
    %v151 = vmul.f32 %v144, %v150
    %vm152 = vcmp.eq.f32.partialorder %v144, inf
    %v153 = vsel %vm152, %v144, %v151
    %vm154 = vcmp.eq.f32.partialorder %v144, 0.0
    %v155 = vand.u32 %v144, 2147483648
    %v156 = vsel %vm154, %v155, %v153
    %v157 = vmax.f32 %v156, 1e-15
    %v158 = vrcp.pop %v121
    %v159 = vmul.f32 %v157, %v158
    %v160 = vmax.f32 %v121, -0.9999999
    %v161 = vmin.f32 %v160, 0.9999999
    %v162 = vadd.f32 %v161, 1.0
    %v163 = vsub.f32 1.0, %v161
    %v164 = vrcp.pop %v163
    %v165 = vmul.f32 %v162, %v164
    %v166 = vlog2.pop %v165
    %v167 = vmul.f32 %v166, 0.6931472
    %v168 = vmul.f32 %v167, 0.5
    %v169 = vmul.f32 %v159, %v168
    %v170 = vtanh.pop %v169
    %v171 = vmin.f32 %v170, 0.996
    %v172 = vrcp.pop %v157
    %v173 = vmul.f32 %v171, %v172
    %v174 = vmul.f32 %v140, %v173
    %vm175 = vcmp.eq.f32.partialorder %v140, 0.0
    %v176 = vsel %vm175, 1.0, 0.0
    %177 = vmin.xlane.f32.xlu0 %v176
    %v178 = vpop.xlane.xlu0 %177
    %vm179 = vcmp.gt.f32.partialorder %v178, 0.0
    %v180 = vsel %vm179, 1, 0
    %vm181 = vcmp.eq.s32.totalorder %v180, 1
    %v182 = vsel %vm181, 0.0, %v174
    %v183 = vmul.f32 %v182, %v182
    %184 = vadd.xlane.f32.xlu0 %v183
    %v185 = vpop.xlane.xlu0 %184
    %v186 = vmul.f32 %v105, %v105
    %vm187 = vcmask 1040384
    %v188 = vsel %vm187, %v186, 0.0
    %189 = vadd.xlane.f32.xlu0 %v188
    %v190 = vpop.xlane.xlu0 %189
    %v192 = vperm.slane %v105, 0
    %v194 = vmul.f32 %v182, %v192
    %195 = vadd.xlane.f32.xlu0 %v194
    %v196 = vpop.xlane.xlu0 %195
    %v197 = vmul.f32 %v196, 2.0
    %v198 = vadd.f32 %v197, 1.0
    %v199 = vperm.slane %v190, 0
    %v200 = vadd.f32 %v198, %v199
    %v201 = vmul.f32 %v200, %v182
    %v202 = vsub.f32 1.0, %v185
    %v203 = vmul.f32 %v202, %v192
    %v204 = vadd.f32 %v201, %v203
    %v205 = vmul.f32 %v185, %v199
    %v206 = vadd.f32 %v198, %v205
    %v207 = vmax.f32 %v206, 1e-15
    %v208 = vrcp.pop %v207
    %v209 = vmul.f32 %v204, %v208
    %v210 = vmul.f32 %v209, %v209
    %211 = vadd.xlane.f32.xlu0 %v210
    %v212 = vpop.xlane.xlu0 %211
    %v213 = vrsqrt.pop %v212
    %v214 = vmul.f32 %v213, %v212
    %v215 = vmul.f32 %v214, %v213
    %v216 = vmul.f32 0.5, %v215
    %v217 = vsub.f32 1.5, %v216
    %v218 = vmul.f32 %v213, %v217
    %v219 = vmul.f32 %v212, %v218
    %vm220 = vcmp.eq.f32.partialorder %v212, inf
    %v221 = vsel %vm220, %v212, %v219
    %vm222 = vcmp.eq.f32.partialorder %v212, 0.0
    %v223 = vand.u32 %v212, 2147483648
    %v224 = vsel %vm222, %v223, %v221
    %v225 = vmax.f32 %v224, 1e-15
    %vm226 = vcmp.gt.f32.partialorder %v225, 0.996
    %v227 = vrcp.pop %v225
    %v228 = vmul.f32 %v227, 0.996
    %v229 = vsel %vm226, %v228, 1.0
    %v230 = vmul.f32 %v209, %v229
    %v231 = vmul.f32 %v230, %v230
    %232 = vadd.xlane.f32.xlu0 %v231
    %v233 = vpop.xlane.xlu0 %232
    %v234 = vrsqrt.pop %v233
    %v235 = vmul.f32 %v234, %v233
    %v236 = vmul.f32 %v235, %v234
    %v237 = vmul.f32 0.5, %v236
    %v238 = vsub.f32 1.5, %v237
    %v239 = vmul.f32 %v234, %v238
    %v240 = vmul.f32 %v233, %v239
    %vm241 = vcmp.eq.f32.partialorder %v233, inf
    %v242 = vsel %vm241, %v233, %v240
    %vm243 = vcmp.eq.f32.partialorder %v233, 0.0
    %v244 = vand.u32 %v233, 2147483648
    %v245 = vsel %vm243, %v244, %v242
    %v246 = vmax.f32 %v245, 1e-15
    %v247 = vmax.f32 %v246, -0.9999999
    %v248 = vmin.f32 %v247, 0.9999999
    %v249 = vadd.f32 %v248, 1.0
    %v250 = vsub.f32 1.0, %v248
    %v251 = vrcp.pop %v250
    %v252 = vmul.f32 %v249, %v251
    %v253 = vlog2.pop %v252
    %v254 = vmul.f32 %v253, 0.6931472
    %v255 = vmul.f32 %v254, 0.5
    %v256 = vrcp.pop %v246
    %v257 = vmul.f32 %v255, %v256
    %v258 = vmul.f32 %v257, %v230
    %v259 = vmax.f32 %v258, 0.0
    %v260 = vmul.f32 %v259, %v259
    %261 = vadd.xlane.f32.xlu0 %v260
    %v262 = vpop.xlane.xlu0 %261
    %v263 = vrsqrt.pop %v262
    %v264 = vmul.f32 %v263, %v262
    %v265 = vmul.f32 %v264, %v263
    %v266 = vmul.f32 0.5, %v265
    %v267 = vsub.f32 1.5, %v266
    %v268 = vmul.f32 %v263, %v267
    %v269 = vmul.f32 %v262, %v268
    %vm270 = vcmp.eq.f32.partialorder %v262, inf
    %v271 = vsel %vm270, %v262, %v269
    %vm272 = vcmp.eq.f32.partialorder %v262, 0.0
    %v273 = vand.u32 %v262, 2147483648
    %v274 = vsel %vm272, %v273, %v271
    %v275 = vmax.f32 %v274, 1e-15
    %v276 = vtanh.pop %v275
    %v277 = vmin.f32 %v276, 0.996
    %v278 = vrcp.pop %v275
    %v279 = vmul.f32 %v277, %v278
    %v280 = vmul.f32 %v259, %v279
    %v281 = vld [vmem:[#allocation7] sm:$0xff]
    %v282 = vld [vmem:[#allocation7 + $0x8] sm:$0xff]
    %v283 = vld [vmem:[#allocation7 + $0x10] sm:$0xff]
    %v284 = vld [vmem:[#allocation7 + $0x18] sm:$0xff]
    %v285 = vld [vmem:[#allocation7 + $0x20] sm:$0xff]
    %v286 = vld [vmem:[#allocation7 + $0x28] sm:$0xff]
    %v287 = vld [vmem:[#allocation7 + $0x30] sm:$0xff]
    %v288 = vld [vmem:[#allocation7 + $0x38] sm:$0xff]
    %v289 = vld [vmem:[#allocation7 + $0x40] sm:$0xff]
    %v290 = vld [vmem:[#allocation7 + $0x48] sm:$0xff]
    %v291 = vld [vmem:[#allocation7 + $0x50] sm:$0xff]
    %v292 = vld [vmem:[#allocation7 + $0x58] sm:$0xff]
    %v293 = vld [vmem:[#allocation7 + $0x60] sm:$0xff]
    %v294 = vld [vmem:[#allocation7 + $0x68] sm:$0xff]
    %v295 = vld [vmem:[#allocation7 + $0x70] sm:$0xff]
    %v296 = vld [vmem:[#allocation7 + $0x78] sm:$0xff]
    %v297 = vld [vmem:[%s4] sm:$0x1]
    %v298 = vmul.f32 %v280, %v280
    %299 = vadd.xlane.f32.xlu0 %v298
    %v300 = vpop.xlane.xlu0 %299
    %v301 = vrsqrt.pop %v300
    %v302 = vmul.f32 %v301, %v300
    %v303 = vmul.f32 %v302, %v301
    %v304 = vmul.f32 0.5, %v303
    %v305 = vsub.f32 1.5, %v304
    %v306 = vmul.f32 %v301, %v305
    %v307 = vmul.f32 %v300, %v306
    %vm308 = vcmp.eq.f32.partialorder %v300, inf
    %v309 = vsel %vm308, %v300, %v307
    %vm310 = vcmp.eq.f32.partialorder %v300, 0.0
    %v311 = vand.u32 %v300, 2147483648
    %v312 = vsel %vm310, %v311, %v309
    %v313 = vmax.f32 %v312, 1e-15
    %314 = vmatpush.msra.mxu0 %v296
    %315 = vmatpush.msra.mxu0 %v295
    %316 = vmatpush.msra.mxu0 %v294
    %317 = vmatpush.msra.mxu0 %v293
    %318 = vmatpush.msra.mxu0 %v292
    %319 = vmatpush.msra.mxu0 %v291
    %320 = vmatpush.msra.mxu0 %v290
    %321 = vmatpush.msra.mxu0 %v289
    %322 = vmatpush.msra.mxu0 %v288
    %323 = vmatpush.msra.mxu0 %v287
    %324 = vmatpush.msra.mxu0 %v286
    %325 = vmatpush.msra.mxu0 %v285
    %326 = vmatpush.msra.mxu0 %v284
    %327 = vmatpush.msra.mxu0 %v283
    %328 = vmatpush.msra.mxu0 %v282
    %329 = vmatpush.msra.mxu0 %v281
    %330 = vmatmul.f32.gmra.mxu0 %v280
    %v331 = vpop.f32.mrf.mxu0
    %v332 = vadd.f32 0.0, %v331
    %333 = vdwg.mxu0
    %v334 = vmul.f32 %v332, %v332
    %335 = vadd.xlane.f32.xlu0 %v334
    %v336 = vpop.xlane.xlu0 %335
    %v337 = vrsqrt.pop %v336
    %v338 = vmul.f32 %v337, %v336
    %v339 = vmul.f32 %v338, %v337
    %v340 = vmul.f32 0.5, %v339
    %v341 = vsub.f32 1.5, %v340
    %v342 = vmul.f32 %v337, %v341
    %v343 = vmul.f32 %v336, %v342
    %vm344 = vcmp.eq.f32.partialorder %v336, inf
    %v345 = vsel %vm344, %v336, %v343
    %vm346 = vcmp.eq.f32.partialorder %v336, 0.0
    %v347 = vand.u32 %v336, 2147483648
    %v348 = vsel %vm346, %v347, %v345
    %v349 = vmax.f32 %v348, 1e-15
    %v350 = vrcp.pop %v313
    %v351 = vmul.f32 %v349, %v350
    %v352 = vmax.f32 %v313, -0.9999999
    %v353 = vmin.f32 %v352, 0.9999999
    %v354 = vadd.f32 %v353, 1.0
    %v355 = vsub.f32 1.0, %v353
    %v356 = vrcp.pop %v355
    %v357 = vmul.f32 %v354, %v356
    %v358 = vlog2.pop %v357
    %v359 = vmul.f32 %v358, 0.6931472
    %v360 = vmul.f32 %v359, 0.5
    %v361 = vmul.f32 %v351, %v360
    %v362 = vtanh.pop %v361
    %v363 = vmin.f32 %v362, 0.996
    %v364 = vrcp.pop %v349
    %v365 = vmul.f32 %v363, %v364
    %v366 = vmul.f32 %v332, %v365
    %vm367 = vcmp.eq.f32.partialorder %v332, 0.0
    %v368 = vsel %vm367, 1.0, 0.0
    %369 = vmin.xlane.f32.xlu0 %v368
    %v370 = vpop.xlane.xlu0 %369
    %vm371 = vcmp.gt.f32.partialorder %v370, 0.0
    %v372 = vsel %vm371, 1, 0
    %vm373 = vcmp.eq.s32.totalorder %v372, 1
    %v374 = vsel %vm373, 0.0, %v366
    %v375 = vmul.f32 %v374, %v374
    %376 = vadd.xlane.f32.xlu0 %v375
    %v377 = vpop.xlane.xlu0 %376
    %v378 = vmul.f32 %v297, %v297
    %v379 = vsel %vm187, %v378, 0.0
    %380 = vadd.xlane.f32.xlu0 %v379
    %v381 = vpop.xlane.xlu0 %380
    %v383 = vperm.slane %v297, 0
    %v385 = vmul.f32 %v374, %v383
    %386 = vadd.xlane.f32.xlu0 %v385
    %v387 = vpop.xlane.xlu0 %386
    %v388 = vmul.f32 %v387, 2.0
    %v389 = vadd.f32 %v388, 1.0
    %v390 = vperm.slane %v381, 0
    %v391 = vadd.f32 %v389, %v390
    %v392 = vmul.f32 %v391, %v374
    %v393 = vsub.f32 1.0, %v377
    %v394 = vmul.f32 %v393, %v383
    %v395 = vadd.f32 %v392, %v394
    %v396 = vmul.f32 %v377, %v390
    %v397 = vadd.f32 %v389, %v396
    %v398 = vmax.f32 %v397, 1e-15
    %v399 = vrcp.pop %v398
    %v400 = vmul.f32 %v395, %v399
    %v401 = vmul.f32 %v400, %v400
    %402 = vadd.xlane.f32.xlu0 %v401
    %v403 = vpop.xlane.xlu0 %402
    %v404 = vrsqrt.pop %v403
    %v405 = vmul.f32 %v404, %v403
    %v406 = vmul.f32 %v405, %v404
    %v407 = vmul.f32 0.5, %v406
    %v408 = vsub.f32 1.5, %v407
    %v409 = vmul.f32 %v404, %v408
    %v410 = vmul.f32 %v403, %v409
    %vm411 = vcmp.eq.f32.partialorder %v403, inf
    %v412 = vsel %vm411, %v403, %v410
    %vm413 = vcmp.eq.f32.partialorder %v403, 0.0
    %v414 = vand.u32 %v403, 2147483648
    %v415 = vsel %vm413, %v414, %v412
    %v416 = vmax.f32 %v415, 1e-15
    %vm417 = vcmp.gt.f32.partialorder %v416, 0.996
    %v418 = vrcp.pop %v416
    %v419 = vmul.f32 %v418, 0.996
    %v420 = vsel %vm417, %v419, 1.0
    %v421 = vmul.f32 %v400, %v420
    %v422 = vmul.f32 %v421, %v421
    %423 = vadd.xlane.f32.xlu0 %v422
    %v424 = vpop.xlane.xlu0 %423
    %v425 = vrsqrt.pop %v424
    %v426 = vmul.f32 %v425, %v424
    %v427 = vmul.f32 %v426, %v425
    %v428 = vmul.f32 0.5, %v427
    %v429 = vsub.f32 1.5, %v428
    %v430 = vmul.f32 %v425, %v429
    %v431 = vmul.f32 %v424, %v430
    %vm432 = vcmp.eq.f32.partialorder %v424, inf
    %v433 = vsel %vm432, %v424, %v431
    %vm434 = vcmp.eq.f32.partialorder %v424, 0.0
    %v435 = vand.u32 %v424, 2147483648
    %v436 = vsel %vm434, %v435, %v433
    %v437 = vmax.f32 %v436, 1e-15
    %v438 = vmax.f32 %v437, -0.9999999
    %v439 = vmin.f32 %v438, 0.9999999
    %v440 = vadd.f32 %v439, 1.0
    %v441 = vsub.f32 1.0, %v439
    %v442 = vrcp.pop %v441
    %v443 = vmul.f32 %v440, %v442
    %v444 = vlog2.pop %v443
    %v445 = vmul.f32 %v444, 0.6931472
    %v446 = vmul.f32 %v445, 0.5
    %v447 = vrcp.pop %v437
    %v448 = vmul.f32 %v446, %v447
    %v449 = vmul.f32 %v448, %v421
    %v450 = vmax.f32 %v449, 0.0
    %v451 = vmul.f32 %v450, %v450
    %452 = vadd.xlane.f32.xlu0 %v451
    %v453 = vpop.xlane.xlu0 %452
    %v454 = vrsqrt.pop %v453
    %v455 = vmul.f32 %v454, %v453
    %v456 = vmul.f32 %v455, %v454
    %v457 = vmul.f32 0.5, %v456
    %v458 = vsub.f32 1.5, %v457
    %v459 = vmul.f32 %v454, %v458
    %v460 = vmul.f32 %v453, %v459
    %vm461 = vcmp.eq.f32.partialorder %v453, inf
    %v462 = vsel %vm461, %v453, %v460
    %vm463 = vcmp.eq.f32.partialorder %v453, 0.0
    %v464 = vand.u32 %v453, 2147483648
    %v465 = vsel %vm463, %v464, %v462
    %v466 = vmax.f32 %v465, 1e-15
    %v467 = vtanh.pop %v466
    %v468 = vmin.f32 %v467, 0.996
    %v469 = vrcp.pop %v466
    %v470 = vmul.f32 %v468, %v469
    %v471 = vmul.f32 %v450, %v470
    %v472 = vld [vmem:[#allocation8] sm:$0xff]
    %v473 = vld [vmem:[#allocation8 + $0x8] sm:$0xff]
    %v474 = vld [vmem:[#allocation8 + $0x10] sm:$0xff]
    %v475 = vld [vmem:[#allocation8 + $0x18] sm:$0xff]
    %v476 = vld [vmem:[#allocation8 + $0x20] sm:$0xff]
    %v477 = vld [vmem:[#allocation8 + $0x28] sm:$0xff]
    %v478 = vld [vmem:[#allocation8 + $0x30] sm:$0xff]
    %v479 = vld [vmem:[#allocation8 + $0x38] sm:$0xff]
    %v480 = vld [vmem:[#allocation8 + $0x40] sm:$0xff]
    %v481 = vld [vmem:[#allocation8 + $0x48] sm:$0xff]
    %v482 = vld [vmem:[#allocation8 + $0x50] sm:$0xff]
    %v483 = vld [vmem:[#allocation8 + $0x58] sm:$0xff]
    %v484 = vld [vmem:[#allocation8 + $0x60] sm:$0xff]
    %v485 = vld [vmem:[#allocation8 + $0x68] sm:$0xff]
    %v486 = vld [vmem:[#allocation8 + $0x70] sm:$0xff]
    %v487 = vld [vmem:[#allocation8 + $0x78] sm:$0xff]
    %v488 = vld [vmem:[%s6] sm:$0x1]
    %v489 = vmul.f32 %v471, %v471
    %490 = vadd.xlane.f32.xlu0 %v489
    %v491 = vpop.xlane.xlu0 %490
    %v492 = vrsqrt.pop %v491
    %v493 = vmul.f32 %v492, %v491
    %v494 = vmul.f32 %v493, %v492
    %v495 = vmul.f32 0.5, %v494
    %v496 = vsub.f32 1.5, %v495
    %v497 = vmul.f32 %v492, %v496
    %v498 = vmul.f32 %v491, %v497
    %vm499 = vcmp.eq.f32.partialorder %v491, inf
    %v500 = vsel %vm499, %v491, %v498
    %vm501 = vcmp.eq.f32.partialorder %v491, 0.0
    %v502 = vand.u32 %v491, 2147483648
    %v503 = vsel %vm501, %v502, %v500
    %v504 = vmax.f32 %v503, 1e-15
    %505 = vmatpush.msra.mxu0 %v487
    %506 = vmatpush.msra.mxu0 %v486
    %507 = vmatpush.msra.mxu0 %v485
    %508 = vmatpush.msra.mxu0 %v484
    %509 = vmatpush.msra.mxu0 %v483
    %510 = vmatpush.msra.mxu0 %v482
    %511 = vmatpush.msra.mxu0 %v481
    %512 = vmatpush.msra.mxu0 %v480
    %513 = vmatpush.msra.mxu0 %v479
    %514 = vmatpush.msra.mxu0 %v478
    %515 = vmatpush.msra.mxu0 %v477
    %516 = vmatpush.msra.mxu0 %v476
    %517 = vmatpush.msra.mxu0 %v475
    %518 = vmatpush.msra.mxu0 %v474
    %519 = vmatpush.msra.mxu0 %v473
    %520 = vmatpush.msra.mxu0 %v472
    %521 = vmatmul.f32.gmra.mxu0 %v471
    %v522 = vpop.f32.mrf.mxu0
    %v523 = vadd.f32 0.0, %v522
    %524 = vdwg.mxu0
    %v525 = vmul.f32 %v523, %v523
    %526 = vadd.xlane.f32.xlu0 %v525
    %v527 = vpop.xlane.xlu0 %526
    %v528 = vrsqrt.pop %v527
    %v529 = vmul.f32 %v528, %v527
    %v530 = vmul.f32 %v529, %v528
    %v531 = vmul.f32 0.5, %v530
    %v532 = vsub.f32 1.5, %v531
    %v533 = vmul.f32 %v528, %v532
    %v534 = vmul.f32 %v527, %v533
    %vm535 = vcmp.eq.f32.partialorder %v527, inf
    %v536 = vsel %vm535, %v527, %v534
    %vm537 = vcmp.eq.f32.partialorder %v527, 0.0
    %v538 = vand.u32 %v527, 2147483648
    %v539 = vsel %vm537, %v538, %v536
    %v540 = vmax.f32 %v539, 1e-15
    %v541 = vrcp.pop %v504
    %v542 = vmul.f32 %v540, %v541
    %v543 = vmax.f32 %v504, -0.9999999
    %v544 = vmin.f32 %v543, 0.9999999
    %v545 = vadd.f32 %v544, 1.0
    %v546 = vsub.f32 1.0, %v544
    %v547 = vrcp.pop %v546
    %v548 = vmul.f32 %v545, %v547
    %v549 = vlog2.pop %v548
    %v550 = vmul.f32 %v549, 0.6931472
    %v551 = vmul.f32 %v550, 0.5
    %v552 = vmul.f32 %v542, %v551
    %v553 = vtanh.pop %v552
    %v554 = vmin.f32 %v553, 0.996
    %v555 = vrcp.pop %v540
    %v556 = vmul.f32 %v554, %v555
    %v557 = vmul.f32 %v523, %v556
    %vm558 = vcmp.eq.f32.partialorder %v523, 0.0
    %v559 = vsel %vm558, 1.0, 0.0
    %560 = vmin.xlane.f32.xlu0 %v559
    %v561 = vpop.xlane.xlu0 %560
    %vm562 = vcmp.gt.f32.partialorder %v561, 0.0
    %v563 = vsel %vm562, 1, 0
    %vm564 = vcmp.eq.s32.totalorder %v563, 1
    %v565 = vsel %vm564, 0.0, %v557
    %v566 = vmul.f32 %v565, %v565
    %567 = vadd.xlane.f32.xlu0 %v566
    %v568 = vpop.xlane.xlu0 %567
    %v569 = vmul.f32 %v488, %v488
    %v570 = vsel %vm187, %v569, 0.0
    %571 = vadd.xlane.f32.xlu0 %v570
    %v572 = vpop.xlane.xlu0 %571
    %v574 = vperm.slane %v488, 0
    %v576 = vmul.f32 %v565, %v574
    %577 = vadd.xlane.f32.xlu0 %v576
    %v578 = vpop.xlane.xlu0 %577
    %v579 = vmul.f32 %v578, 2.0
    %v580 = vadd.f32 %v579, 1.0
    %v581 = vperm.slane %v572, 0
    %v582 = vadd.f32 %v580, %v581
    %v583 = vmul.f32 %v582, %v565
    %v584 = vsub.f32 1.0, %v568
    %v585 = vmul.f32 %v584, %v574
    %v586 = vadd.f32 %v583, %v585
    %v587 = vmul.f32 %v568, %v581
    %v588 = vadd.f32 %v580, %v587
    %v589 = vmax.f32 %v588, 1e-15
    %v590 = vrcp.pop %v589
    %v591 = vmul.f32 %v586, %v590
    %v592 = vmul.f32 %v591, %v591
    %593 = vadd.xlane.f32.xlu0 %v592
    %v594 = vpop.xlane.xlu0 %593
    %v595 = vrsqrt.pop %v594
    %v596 = vmul.f32 %v595, %v594
    %v597 = vmul.f32 %v596, %v595
    %v598 = vmul.f32 0.5, %v597
    %v599 = vsub.f32 1.5, %v598
    %v600 = vmul.f32 %v595, %v599
    %v601 = vmul.f32 %v594, %v600
    %vm602 = vcmp.eq.f32.partialorder %v594, inf
    %v603 = vsel %vm602, %v594, %v601
    %vm604 = vcmp.eq.f32.partialorder %v594, 0.0
    %v605 = vand.u32 %v594, 2147483648
    %v606 = vsel %vm604, %v605, %v603
    %v607 = vmax.f32 %v606, 1e-15
    %vm608 = vcmp.gt.f32.partialorder %v607, 0.996
    %v609 = vrcp.pop %v607
    %v610 = vmul.f32 %v609, 0.996
    %v611 = vsel %vm608, %v610, 1.0
    %v612 = vmul.f32 %v591, %v611
    %613 = vst [vmem:[#allocation10] sm:$0xff] %v612
    // Predicated region
    $region46: #{tpu_custom_call.1} parent=1 // pred_check
      _
    $region47: #{tpu_custom_call.1} parent=1 // pred_check_branch
      %615 = sbr.rel (0) target = $region49
    $region48: #{tpu_custom_call.1} parent=1 // pred_region
      %617 = vsyncadd [#allocation4], 0
      %s619 = sshll.u32 [#allocation10], 4
      %s620 = int_to_ptr.vmem [resolvable:$true] %s619
      %s621 = sshll.u32 %s7, 4
      %s622 = int_to_ptr.hbm [resolvable:$true] %s621
      %624 = dma.vmem_to_hbm [thread:$0]  %s620, 128, %s622, [#allocation4]
    $region49: #{tpu_custom_call.1} parent=1 // pred_fallthru
      _
    // Predicated region
    $region50: #{tpu_custom_call.1} parent=1 // pred_check
      _
    $region51: #{tpu_custom_call.1} parent=1 // pred_check_branch
      %626 = sbr.rel (0) target = $region53
    $region52: #{tpu_custom_call.1} parent=1 // pred_region
      %628 = dma.done [#allocation4], 128
    $region53: #{tpu_custom_call.1} parent=1 // pred_fallthru
      _
    %629 = vsyncpa [#allocation3], 1
    %630 = vsyncpa [#allocation6], 1
    %631 = vsyncpa [#allocation9], 1
    %632 = vsyncpa [#allocation4], 1

</llo_original>
